<compile_context>
chip_gen: v7x
topology: tpu7x:2x2x1
jax: 0.10.0
libtpu: 0.0.40
codegen_flags: <defaults>
</compile_context>

<pallas_src>
import jax
import jax.numpy as jnp
from jax.experimental import pallas as pl
from jax.experimental.pallas import tpu as pltpu

EPS = 1e-8  # torch.cosine_similarity default eps

_STREAM_BUDGET = 12 * 1024 * 1024  # VMEM budget for the streamed (double-buffered) inputs


def _round_up(x, m):
    return ((x + m - 1) // m) * m


def _sublane_multiple(itemsize):
    return {4: 8, 2: 16, 1: 32}.get(itemsize, 8)


def _choose_tile_b(B, D, doc_itemsize):
    """Biggest batch tile that keeps the streamed doc/label buffers within budget."""
    sub = _sublane_multiple(doc_itemsize)
    lane_d = _round_up(D, 128)
    # Bytes per batch row, per pipeline buffer: doc1 + doc2 (lane-padded) + labels
    # ((tile_b,1) f32 block is padded to 128 lanes).  x2 for double-buffering.
    per_row = 2 * (2 * lane_d * doc_itemsize + 128 * 4)
    cap = max(sub, _STREAM_BUDGET // per_row)
    b_ceil = _round_up(B, sub)
    if cap >= b_ceil:
        # Whole batch fits one tile; keep 256-alignment only when it matters for chunking.
        tile_b = _round_up(B, 256) if b_ceil > 512 else b_ceil
    elif cap >= 256:
        tile_b = (cap // 256) * 256          # MXU-row-friendly multiple
    else:
        tile_b = max(sub, (cap // sub) * sub)
    return tile_b


def _vmem_limit_bytes(tile_b, chunk_b, D, E, doc_itemsize, w_itemsize):
    lane_d = _round_up(D, 128)
    lane_e = _round_up(E, 128)
    docs = 2 * 2 * _round_up(tile_b, 8) * lane_d * doc_itemsize   # doc1+doc2, double-buffered
    labels = 2 * _round_up(tile_b, 8) * 128 * 4                   # (tile_b,1) f32, lane-padded
    w_res = 2 * _round_up(D, 8) * lane_e * w_itemsize             # resident W
    bias = 2 * 8 * lane_e * 4
    temps = 8 * _round_up(chunk_b, 8) * lane_e * 4                # e1/e2 + elementwise f32 temps
    total = docs + labels + w_res + bias + temps + (4 << 20)      # + headroom
    return int(min(max(total, 24 << 20), 48 << 20))               # stay under v7x 64 MiB phys


def _make_loss_kernel(batch, tile_b, chunk_b, n_chunks, needs_mask):
    unroll = min(n_chunks, 8)

    def kernel(doc1_ref, doc2_ref, w_ref, b_ref, labels_ref, out_ref):
        i = pl.program_id(0)
        w = w_ref[...]                                  # resident weight, loaded once
        bias = b_ref[...].astype(jnp.float32)           # (1, E)

        def chunk_sse(d1, d2, y, row_base, apply_mask):
            # Two dots sharing the same RHS (W stays loaded in the MXU), f32 accumulation.
            e1 = jnp.dot(d1, w, preferred_element_type=jnp.float32) + bias
            e2 = jnp.dot(d2, w, preferred_element_type=jnp.float32) + bias
            # Cosine similarity along the embedding dim; matches torch eps handling:
            #   denom = max(||e1||, eps) * max(||e2||, eps)
            #         = sqrt(max(n1, eps^2) * max(n2, eps^2))
            dot12 = jnp.sum(e1 * e2, axis=-1, keepdims=True)        # (rows, 1)
            n1 = jnp.sum(e1 * e1, axis=-1, keepdims=True)
            n2 = jnp.sum(e2 * e2, axis=-1, keepdims=True)
            inv_denom = jax.lax.rsqrt(
                jnp.maximum(n1, EPS * EPS) * jnp.maximum(n2, EPS * EPS))
            sim = dot12 * inv_denom
            diff = sim - y.astype(jnp.float32)
            sq = diff * diff
            if apply_mask:  # static: only traced for the last tile of a padded batch
                rows = row_base + jax.lax.broadcasted_iota(
                    jnp.int32, (d1.shape[0], 1), 0)
                sq = jnp.where(rows < batch, sq, 0.0)
            return jnp.sum(sq, axis=(0, 1), keepdims=True)           # (1, 1)

        def tile_sse(apply_mask):
            if n_chunks == 1:
                return chunk_sse(doc1_ref[...], doc2_ref[...], labels_ref[...],
                                 i * tile_b, apply_mask)

            def body(c, acc):
                r0 = pl.multiple_of(c * chunk_b, chunk_b)
                return acc + chunk_sse(
                    doc1_ref[pl.ds(r0, chunk_b), :],
                    doc2_ref[pl.ds(r0, chunk_b), :],
                    labels_ref[pl.ds(r0, chunk_b), :],
                    i * tile_b + r0, apply_mask)

            return jax.lax.fori_loop(0, n_chunks, body,
                                     jnp.zeros((1, 1), jnp.float32),
                                     unroll=unroll)

        if needs_mask:
            last = pl.num_programs(0) - 1

            @pl.when(i == last)      # only the last tile can contain padded rows
            def _masked():
                out_ref[...] = tile_sse(True)

            @pl.when(i != last)
            def _plain():
                out_ref[...] = tile_sse(False)
        else:
            out_ref[...] = tile_sse(False)

    return kernel


def loss_model_forward(doc1, doc2, w, b, labels, *, tile_b=None):
    """Pallas implementation of LossModel.forward((doc1, doc2), labels) for a linear encoder."""
    B, D = doc1.shape
    E = w.shape[1]
    doc_itemsize = jnp.dtype(doc1.dtype).itemsize
    sub = _sublane_multiple(doc_itemsize)

    if tile_b is None:
        tile_b = _choose_tile_b(B, D, doc_itemsize)
    else:
        tile_b = _round_up(tile_b, sub)

    b_pad = _round_up(B, tile_b)
    num_tiles = b_pad // tile_b
    needs_mask = (b_pad != B)

    # Chunk the post-matmul math for large tiles (bounds lane-sparse live ranges).
    if tile_b > 512 and tile_b % 256 == 0:
        chunk_b, n_chunks = 256, tile_b // 256
    else:
        chunk_b, n_chunks = tile_b, 1

    labels_flat = labels.reshape(-1).astype(jnp.float32)
    if needs_mask:
        pad = b_pad - B
        doc1 = jnp.pad(doc1, ((0, pad), (0, 0)))
        doc2 = jnp.pad(doc2, ((0, pad), (0, 0)))
        labels_flat = jnp.pad(labels_flat, ((0, pad),))

    labels2 = labels_flat.reshape(b_pad, 1)
    bias2 = b.reshape(1, E)

    kernel = _make_loss_kernel(B, tile_b, chunk_b, n_chunks, needs_mask)
    vmem_limit = _vmem_limit_bytes(tile_b, chunk_b, D, E,
                                   doc_itemsize, jnp.dtype(w.dtype).itemsize)

    partial = pl.pallas_call(
        kernel,
        out_shape=jax.ShapeDtypeStruct((num_tiles, 1), jnp.float32),
        grid_spec=pltpu.PrefetchScalarGridSpec(
            num_scalar_prefetch=0,
            grid=(num_tiles,),
            in_specs=[
                pl.BlockSpec((tile_b, D), lambda i: (i, 0)),   # doc1 tile (streamed)
                pl.BlockSpec((tile_b, D), lambda i: (i, 0)),   # doc2 tile (streamed)
                pl.BlockSpec((D, E), lambda i: (0, 0)),        # W (VMEM-resident)
                pl.BlockSpec((1, E), lambda i: (0, 0)),        # bias (VMEM-resident)
                pl.BlockSpec((tile_b, 1), lambda i: (i, 0)),   # labels tile (streamed)
            ],
            out_specs=pl.BlockSpec((1, 1), lambda i: (i, 0)),  # per-tile partial SSE
        ),
        compiler_params=pltpu.CompilerParams(
            dimension_semantics=("parallel",),   # megacore-shardable on v7x
            vmem_limit_bytes=vmem_limit),
    )(doc1, doc2, w, bias2, labels2)

    # Final reduction + mean over the true batch in plain JAX (tiny).
    return jnp.sum(partial) / B


def _reference(doc1, doc2, w, b, labels):
    """Pure-JAX reference reproducing torch semantics exactly (f32 math)."""
    f32 = jnp.float32
    e1 = doc1.astype(f32) @ w.astype(f32) + b.astype(f32)
    e2 = doc2.astype(f32) @ w.astype(f32) + b.astype(f32)
    n1 = jnp.maximum(jnp.sqrt(jnp.sum(e1 * e1, axis=-1)), EPS)
    n2 = jnp.maximum(jnp.sqrt(jnp.sum(e2 * e2, axis=-1)), EPS)
    sim = jnp.sum(e1 * e2, axis=-1) / (n1 * n2)
    return jnp.mean((sim - labels.reshape(-1).astype(f32)) ** 2)


if __name__ == "__main__":
    key = jax.random.PRNGKey(0)
    k1, k2, k3, k4, k5 = jax.random.split(key, 5)

    # --- Small f32 case (single tile, no padding) ---
    B, D, E = 8, 32, 64
    doc1 = jax.random.normal(k1, (B, D), dtype=jnp.float32)
    doc2 = jax.random.normal(k2, (B, D), dtype=jnp.float32)
    w = jax.random.normal(k3, (D, E), dtype=jnp.float32) * (1.0 / jnp.sqrt(D))
    b = jax.random.normal(k4, (E,), dtype=jnp.float32) * 0.01
    labels = jax.random.uniform(k5, (B,), dtype=jnp.float32, minval=-1.0, maxval=1.0)

    loss = jax.block_until_ready(loss_model_forward(doc1, doc2, w, b, labels))
    ref = _reference(doc1, doc2, w, b, labels)
    assert jnp.allclose(loss, ref, rtol=1e-5, atol=1e-6), (loss, ref)

    # --- bf16 streaming path (padded batch: bf16 sublane multiple forces masking) ---
    loss_bf16 = jax.block_until_ready(loss_model_forward(
        doc1.astype(jnp.bfloat16), doc2.astype(jnp.bfloat16),
        w.astype(jnp.bfloat16), b, labels))
    ref_bf16 = _reference(doc1.astype(jnp.bfloat16).astype(jnp.float32),
                          doc2.astype(jnp.bfloat16).astype(jnp.float32),
                          w.astype(jnp.bfloat16).astype(jnp.float32), b, labels)
    assert jnp.allclose(loss_bf16, ref_bf16, rtol=5e-2, atol=5e-3), (loss_bf16, ref_bf16)

    # --- Medium f32 case: multi-tile parallel grid, chunked in-kernel reduction, mask ---
    kb1, kb2, kb3, kb4, kb5 = jax.random.split(jax.random.PRNGKey(1), 5)
    B2, D2, E2 = 3000, 256, 128
    doc1b = jax.random.normal(kb1, (B2, D2), dtype=jnp.float32)
    doc2b = jax.random.normal(kb2, (B2, D2), dtype=jnp.float32)
    w2 = jax.random.normal(kb3, (D2, E2), dtype=jnp.float32) * (1.0 / jnp.sqrt(D2))
    b2 = jax.random.normal(kb4, (E2,), dtype=jnp.float32) * 0.01
    labels2 = jax.random.uniform(kb5, (B2,), dtype=jnp.float32, minval=-1.0, maxval=1.0)

    loss2 = jax.block_until_ready(loss_model_forward(doc1b, doc2b, w2, b2, labels2))
    ref2 = _reference(doc1b, doc2b, w2, b2, labels2)
    assert jnp.allclose(loss2, ref2, rtol=1e-2, atol=1e-4), (loss2, ref2)

    print("KERNEL_OK")
</pallas_src>

<mosaic_0001>
module attributes {stable_mosaic.version = 11 : i64} {
  func.func @kernel(%arg0: i32, %arg1: memref<8x32xf32, #tpu.memory_space<vmem>>, %arg2: memref<8x32xf32, #tpu.memory_space<vmem>>, %arg3: memref<32x64xf32, #tpu.memory_space<vmem>>, %arg4: memref<1x64xf32, #tpu.memory_space<vmem>>, %arg5: memref<8x1xf32, #tpu.memory_space<vmem>>, %arg6: memref<1x1xf32, #tpu.memory_space<vmem>>) attributes {dimension_semantics = [#tpu.dimension_semantics<parallel>], iteration_bounds = array<i64: 1>, scalar_prefetch = 0 : i64, scratch_operands = 0 : i64, tpu.core_type = #tpu.core_type<tc>, window_params = [{transform_indices = @transform_0, window_bounds = array<i64: 8, 32>}, {transform_indices = @transform_1, window_bounds = array<i64: 8, 32>}, {pipeline_mode = #tpu.pipeline_mode<synchronous>, transform_indices = @transform_2, window_bounds = array<i64: 32, 64>}, {pipeline_mode = #tpu.pipeline_mode<synchronous>, transform_indices = @transform_3, window_bounds = array<i64: 1, 64>}, {transform_indices = @transform_4, window_bounds = array<i64: 8, 1>}, {transform_indices = @transform_5, window_bounds = array<i64: 1, 1>}]} {
    %c0 = arith.constant 0 : index
    %c0_0 = arith.constant 0 : index
    %0 = vector.load %arg3[%c0, %c0_0] : memref<32x64xf32, #tpu.memory_space<vmem>>, vector<32x64xf32>
    %c0_1 = arith.constant 0 : index
    %c0_2 = arith.constant 0 : index
    %1 = vector.load %arg4[%c0_1, %c0_2] : memref<1x64xf32, #tpu.memory_space<vmem>>, vector<1x64xf32>
    %c0_3 = arith.constant 0 : index
    %c0_4 = arith.constant 0 : index
    %2 = vector.load %arg1[%c0_3, %c0_4] : memref<8x32xf32, #tpu.memory_space<vmem>>, vector<8x32xf32>
    %c0_5 = arith.constant 0 : index
    %c0_6 = arith.constant 0 : index
    %3 = vector.load %arg2[%c0_5, %c0_6] : memref<8x32xf32, #tpu.memory_space<vmem>>, vector<8x32xf32>
    %c0_7 = arith.constant 0 : index
    %c0_8 = arith.constant 0 : index
    %4 = vector.load %arg5[%c0_7, %c0_8] : memref<8x1xf32, #tpu.memory_space<vmem>>, vector<8x1xf32>
    %cst = arith.constant dense<0.000000e+00> : vector<8x64xf32>
    %5 = tpu.matmul %2, %0, %cst {dimension_numbers = #tpu.dot_dimension_numbers<[1], [0], [0], [1], [0, 0, 1, 1], [], []>} : vector<8x32xf32>, vector<32x64xf32>, vector<8x64xf32> -> vector<8x64xf32>
    %6 = vector.broadcast %1 : vector<1x64xf32> to vector<8x64xf32>
    %7 = arith.addf %5, %6 : vector<8x64xf32>
    %cst_9 = arith.constant dense<0.000000e+00> : vector<8x64xf32>
    %8 = tpu.matmul %3, %0, %cst_9 {dimension_numbers = #tpu.dot_dimension_numbers<[1], [0], [0], [1], [0, 0, 1, 1], [], []>} : vector<8x32xf32>, vector<32x64xf32>, vector<8x64xf32> -> vector<8x64xf32>
    %9 = vector.broadcast %1 : vector<1x64xf32> to vector<8x64xf32>
    %10 = arith.addf %8, %9 : vector<8x64xf32>
    %11 = arith.mulf %7, %10 : vector<8x64xf32>
    %cst_10 = arith.constant dense<0.000000e+00> : vector<8xf32>
    %12 = vector.multi_reduction <add>, %11, %cst_10 [1] : vector<8x64xf32> to vector<8xf32>
    %13 = vector.shape_cast %12 : vector<8xf32> to vector<8x1xf32>
    %14 = arith.mulf %7, %7 : vector<8x64xf32>
    %cst_11 = arith.constant dense<0.000000e+00> : vector<8xf32>
    %15 = vector.multi_reduction <add>, %14, %cst_11 [1] : vector<8x64xf32> to vector<8xf32>
    %16 = vector.shape_cast %15 : vector<8xf32> to vector<8x1xf32>
    %17 = arith.mulf %10, %10 : vector<8x64xf32>
    %cst_12 = arith.constant dense<0.000000e+00> : vector<8xf32>
    %18 = vector.multi_reduction <add>, %17, %cst_12 [1] : vector<8x64xf32> to vector<8xf32>
    %19 = vector.shape_cast %18 : vector<8xf32> to vector<8x1xf32>
    %cst_13 = arith.constant 1.000000e-16 : f32
    %20 = vector.broadcast %cst_13 : f32 to vector<8x1xf32>
    %21 = arith.maximumf %16, %20 : vector<8x1xf32>
    %cst_14 = arith.constant 1.000000e-16 : f32
    %22 = vector.broadcast %cst_14 : f32 to vector<8x1xf32>
    %23 = arith.maximumf %19, %22 : vector<8x1xf32>
    %24 = arith.mulf %21, %23 : vector<8x1xf32>
    %25 = math.rsqrt %24 : vector<8x1xf32>
    %26 = arith.mulf %13, %25 : vector<8x1xf32>
    %27 = arith.subf %26, %4 : vector<8x1xf32>
    %28 = arith.mulf %27, %27 : vector<8x1xf32>
    %29 = vector.shape_cast %28 : vector<8x1xf32> to vector<1x8x1xf32>
    %cst_15 = arith.constant dense<0.000000e+00> : vector<1xf32>
    %30 = vector.multi_reduction <add>, %29, %cst_15 [1, 2] : vector<1x8x1xf32> to vector<1xf32>
    %31 = vector.shape_cast %30 : vector<1xf32> to vector<1x1x1xf32>
    %32 = vector.extract %31[0, 0, 0] : f32 from vector<1x1x1xf32>
    %33 = vector.broadcast %32 : f32 to vector<1x1xf32>
    %c0_16 = arith.constant 0 : index
    %c0_17 = arith.constant 0 : index
    %34 = vector.load %arg6[%c0_16, %c0_17] : memref<1x1xf32, #tpu.memory_space<vmem>>, vector<1x1xf32>
    tpu.vector_store %arg6[%c0_16, %c0_17], %33 {strides = array<i32>} : memref<1x1xf32, #tpu.memory_space<vmem>>, vector<1x1xf32>,
    return
  }
  func.func @transform_0(%arg0: i32) -> (i32, i32) {
    %c0_i32 = arith.constant 0 : i32
    %c0_i32_0 = arith.constant 0 : i32
    return %arg0, %c0_i32 : i32, i32
  }
  func.func @transform_1(%arg0: i32) -> (i32, i32) {
    %c0_i32 = arith.constant 0 : i32
    %c0_i32_0 = arith.constant 0 : i32
    return %arg0, %c0_i32 : i32, i32
  }
  func.func @transform_2(%arg0: i32) -> (i32, i32) {
    %c0_i32 = arith.constant 0 : i32
    %c0_i32_0 = arith.constant 0 : i32
    %c0_i32_1 = arith.constant 0 : i32
    return %c0_i32, %c0_i32_0 : i32, i32
  }
  func.func @transform_3(%arg0: i32) -> (i32, i32) {
    %c0_i32 = arith.constant 0 : i32
    %c0_i32_0 = arith.constant 0 : i32
    %c0_i32_1 = arith.constant 0 : i32
    return %c0_i32, %c0_i32_0 : i32, i32
  }
  func.func @transform_4(%arg0: i32) -> (i32, i32) {
    %c0_i32 = arith.constant 0 : i32
    %c0_i32_0 = arith.constant 0 : i32
    return %arg0, %c0_i32 : i32, i32
  }
  func.func @transform_5(%arg0: i32) -> (i32, i32) {
    %c0_i32 = arith.constant 0 : i32
    %c0_i32_0 = arith.constant 0 : i32
    return %arg0, %c0_i32 : i32, i32
  }
}

</mosaic_0001>

<llo_original>
// kernel: tpu_custom_call.1
$region0: #{tpu_custom_call.1}
  #allocation0 [shape = 'u32[]', space=smem, size = 0x4, offset = 0x4, fixed_abs, tag = 'smem constant byte address 0x4 - core index']
  #allocation1 [shape = 'u32[144,128]{1,0:T(1,128)}', space=vmem, size = 0x12000, scoped, tag = 'internal scratch']
  %s0 = inlined_call_operand.vmem [shape: f32[8,32], index: 0, kind: input, shape index: {}]
  %s1 = inlined_call_operand.hbm [shape: f32[8,32], index: 1, kind: input, shape index: {}]
  %s2 = inlined_call_operand.hbm [shape: f32[32,64], index: 2, kind: input, shape index: {}]
  %s3 = inlined_call_operand.vmem [shape: f32[1,64], index: 3, kind: input, shape index: {}]
  %s4 = inlined_call_operand.vmem [shape: f32[8,1], index: 4, kind: input, shape index: {}]
  %s5 = inlined_call_operand.hbm [shape: f32[1,1], index: 5, kind: output, shape index: {}]
  %s6 = sld [smem:[#allocation0]]
  $region38: #{tpu_custom_call.1} parent=0
    _
  %s8 = ssub.s32 1, %s6
  %s9 = scalar_select 0, %s8, %s6
  $region1: #{tpu_custom_call.1} parent=0
    #allocation2 [shape = 'u8[4096]{0}', space=vmem, size = 0x1000, scoped, tag = 'input window, operand 1, single buffered']
    #allocation3 [shape = 's32[1]{0}', space=sflag, size = 0x4, scoped, tag = 'scoped memory for tpu_custom_call.1']
    #allocation4 [shape = 's32[1]{0}', space=sflag, size = 0x4, scoped, tag = 'scoped memory for tpu_custom_call.1']
    #allocation5 [shape = 'u8[16384]{0}', space=vmem, size = 0x4000, scoped, tag = 'input window, operand 2, single buffered']
    #allocation6 [shape = 's32[1]{0}', space=sflag, size = 0x4, scoped, tag = 'scoped memory for tpu_custom_call.1']
    #allocation7 [shape = 'u8[512]{0}', space=vmem, size = 0x400, scoped, tag = 'output window, operand 0, single buffered']
    %10 = vsyncpa [#allocation3], 0
    %11 = vsyncpa [#allocation6], 0
    %12 = vsyncpa [#allocation4], 0
    // Predicated region
    $region2: #{tpu_custom_call.1} parent=1 // pred_check
      _
    $region3: #{tpu_custom_call.1} parent=1 // pred_check_branch
      %14 = sbr.rel (0) target = $region5
    $region4: #{tpu_custom_call.1} parent=1 // pred_region
      _
    $region5: #{tpu_custom_call.1} parent=1 // pred_fallthru
      _
    // Predicated region
    $region6: #{tpu_custom_call.1} parent=1 // pred_check
      _
    $region7: #{tpu_custom_call.1} parent=1 // pred_check_branch
      %16 = sbr.rel (0) target = $region9
    $region8: #{tpu_custom_call.1} parent=1 // pred_region
      %s18 = ssub.s32 128, 128
      %19 = vsyncadd [#allocation3], %s18
      %s21 = sshll.u32 [#allocation2], 4
      %s22 = int_to_ptr.vmem [resolvable:$true] %s21
      %24 = dma.hbm_to_vmem [thread:$0]  %s1, 128, %s22, [#allocation3]
    $region9: #{tpu_custom_call.1} parent=1 // pred_fallthru
      _
    // Predicated region
    $region10: #{tpu_custom_call.1} parent=1 // pred_check
      _
    $region11: #{tpu_custom_call.1} parent=1 // pred_check_branch
      %26 = sbr.rel (0) target = $region13
    $region12: #{tpu_custom_call.1} parent=1 // pred_region
      %s28 = ssub.s32 512, 512
      %29 = vsyncadd [#allocation6], %s28
      %s30 = sshll.u32 [#allocation5], 4
      %s31 = int_to_ptr.vmem [resolvable:$true] %s30
      %36 = dma.hbm_to_vmem [thread:$0]  %s2, 512, %s31, [#allocation6], 128, 128, 8
    $region13: #{tpu_custom_call.1} parent=1 // pred_fallthru
      _
    // Predicated region
    $region14: #{tpu_custom_call.1} parent=1 // pred_check
      _
    $region15: #{tpu_custom_call.1} parent=1 // pred_check_branch
      %38 = sbr.rel (0) target = $region17
    $region16: #{tpu_custom_call.1} parent=1 // pred_region
      _
    $region17: #{tpu_custom_call.1} parent=1 // pred_fallthru
      _
    // Predicated region
    $region18: #{tpu_custom_call.1} parent=1 // pred_check
      _
    $region19: #{tpu_custom_call.1} parent=1 // pred_check_branch
      %40 = sbr.rel (0) target = $region21
    $region20: #{tpu_custom_call.1} parent=1 // pred_region
      _
    $region21: #{tpu_custom_call.1} parent=1 // pred_fallthru
      _
    // Predicated region
    $region22: #{tpu_custom_call.1} parent=1 // pred_check
      _
    $region23: #{tpu_custom_call.1} parent=1 // pred_check_branch
      %42 = sbr.rel (0) target = $region25
    $region24: #{tpu_custom_call.1} parent=1 // pred_region
      %43 = dma.done [#allocation3], 128
    $region25: #{tpu_custom_call.1} parent=1 // pred_fallthru
      _
    // Predicated region
    $region26: #{tpu_custom_call.1} parent=1 // pred_check
      _
    $region27: #{tpu_custom_call.1} parent=1 // pred_check_branch
      %45 = sbr.rel (0) target = $region29
    $region28: #{tpu_custom_call.1} parent=1 // pred_region
      %46 = dma.done [#allocation6], 512
    $region29: #{tpu_custom_call.1} parent=1 // pred_fallthru
      _
    %v47 = vld [vmem:[#allocation5] sm:$0xff]
    %v48 = vld [vmem:[#allocation5 + $0x8] sm:$0xff]
    %v49 = vld [vmem:[#allocation5 + $0x10] sm:$0xff]
    %v50 = vld [vmem:[#allocation5 + $0x18] sm:$0xff]
    %v51 = vld [vmem:[%s3] sm:$0x1]
    %v52 = vld [vmem:[%s0] sm:$0xff]
    %v53 = vld [vmem:[#allocation2] sm:$0xff]
    %v54 = vld [vmem:[%s4] sm:$0xff]
    %v56 = vlaneseq
    %v57 = vshrl.u32 %v56, 7
    %v58 = vsub.s32 0, %v57
    %v59 = vrot.slane %v51, %v58
    %vm61 = vcmask 261120
    %v63 = vsel %vm61, %v52, 0
    %65 = vmatprep.subr.mxu0 0.0
    %66 = vmatpush1.msra.mxu0 %v47
    %67 = vmatprep.subr.mxu0 0.0
    %68 = vmatpush1.msra.mxu0 %v48
    %69 = vmatprep.subr.mxu0 0.0
    %70 = vmatpush1.msra.mxu0 %v49
    %71 = vmatprep.subr.mxu0 0.0
    %72 = vmatpush1.msra.mxu0 %v50
    %73 = vmatprep.subr.mxu0 0.0
    %74 = vmatpush1.msra.mxu0 0.0
    %75 = vmatprep.subr.mxu0 0.0
    %76 = vmatpush1.msra.mxu0 0.0
    %77 = vmatprep.subr.mxu0 0.0
    %78 = vmatpush1.msra.mxu0 0.0
    %79 = vmatprep.subr.mxu0 0.0
    %80 = vmatpush1.msra.mxu0 0.0
    %81 = vmatprep.subr.mxu0 0.0
    %82 = vmatpush1.msra.mxu0 0.0
    %83 = vmatprep.subr.mxu0 0.0
    %84 = vmatpush1.msra.mxu0 0.0
    %85 = vmatprep.subr.mxu0 0.0
    %86 = vmatpush1.msra.mxu0 0.0
    %87 = vmatprep.subr.mxu0 0.0
    %88 = vmatpush1.msra.mxu0 0.0
    %89 = vmatprep.subr.mxu0 0.0
    %90 = vmatpush1.msra.mxu0 0.0
    %91 = vmatprep.subr.mxu0 0.0
    %92 = vmatpush1.msra.mxu0 0.0
    %93 = vmatprep.subr.mxu0 0.0
    %94 = vmatpush1.msra.mxu0 0.0
    %95 = vmatprep.subr.mxu0 0.0
    %96 = vmatpush1.msra.mxu0 0.0
    %97 = vmatprep.subr.mxu0 0.0
    %98 = vmatpush1.msra.mxu0 0.0
    %99 = vmatprep.subr.mxu0 0.0
    %100 = vmatpush1.msra.mxu0 0.0
    %101 = vmatprep.subr.mxu0 0.0
    %102 = vmatpush1.msra.mxu0 0.0
    %103 = vmatprep.subr.mxu0 0.0
    %104 = vmatpush1.msra.mxu0 0.0
    %105 = vmatprep.subr.mxu0 0.0
    %106 = vmatpush1.msra.mxu0 0.0
    %107 = vmatprep.subr.mxu0 0.0
    %108 = vmatpush1.msra.mxu0 0.0
    %109 = vmatprep.subr.mxu0 0.0
    %110 = vmatpush1.msra.mxu0 0.0
    %111 = vmatprep.subr.mxu0 0.0
    %112 = vmatpush1.msra.mxu0 0.0
    %113 = vmatprep.subr.mxu0 0.0
    %114 = vmatpush1.msra.mxu0 0.0
    %115 = vmatprep.subr.mxu0 0.0
    %116 = vmatpush1.msra.mxu0 0.0
    %117 = vmatprep.subr.mxu0 0.0
    %118 = vmatpush1.msra.mxu0 0.0
    %119 = vmatprep.subr.mxu0 0.0
    %120 = vmatpush1.msra.mxu0 0.0
    %121 = vmatprep.subr.mxu0 0.0
    %122 = vmatpush1.msra.mxu0 0.0
    %123 = vmatprep.subr.mxu0 0.0
    %124 = vmatpush1.msra.mxu0 0.0
    %125 = vmatprep.subr.mxu0 0.0
    %126 = vmatpush1.msra.mxu0 0.0
    %127 = vmatprep.subr.mxu0 0.0
    %128 = vmatpush1.msra.mxu0 0.0
    %129 = vmatprep.mubr.f32.mxu0 0.0
    %130 = vmatmul.mubr.f32.gmra.mrb[0].mxu0 %v63
    %v131 = vpop.f32.mrb[0].mxu0
    %v132 = vadd.f32 %v59, %v131
    %v133 = vpop.f32.mrb[0].mxu0
    %134 = vdwg.mxu0
    %v136 = vsel %vm61, %v53, 0
    %138 = vmatprep.subr.mxu0 0.0
    %139 = vmatpush1.msra.mxu0 %v47
    %140 = vmatprep.subr.mxu0 0.0
    %141 = vmatpush1.msra.mxu0 %v48
    %142 = vmatprep.subr.mxu0 0.0
    %143 = vmatpush1.msra.mxu0 %v49
    %144 = vmatprep.subr.mxu0 0.0
    %145 = vmatpush1.msra.mxu0 %v50
    %146 = vmatprep.subr.mxu0 0.0
    %147 = vmatpush1.msra.mxu0 0.0
    %148 = vmatprep.subr.mxu0 0.0
    %149 = vmatpush1.msra.mxu0 0.0
    %150 = vmatprep.subr.mxu0 0.0
    %151 = vmatpush1.msra.mxu0 0.0
    %152 = vmatprep.subr.mxu0 0.0
    %153 = vmatpush1.msra.mxu0 0.0
    %154 = vmatprep.subr.mxu0 0.0
    %155 = vmatpush1.msra.mxu0 0.0
    %156 = vmatprep.subr.mxu0 0.0
    %157 = vmatpush1.msra.mxu0 0.0
    %158 = vmatprep.subr.mxu0 0.0
    %159 = vmatpush1.msra.mxu0 0.0
    %160 = vmatprep.subr.mxu0 0.0
    %161 = vmatpush1.msra.mxu0 0.0
    %162 = vmatprep.subr.mxu0 0.0
    %163 = vmatpush1.msra.mxu0 0.0
    %164 = vmatprep.subr.mxu0 0.0
    %165 = vmatpush1.msra.mxu0 0.0
    %166 = vmatprep.subr.mxu0 0.0
    %167 = vmatpush1.msra.mxu0 0.0
    %168 = vmatprep.subr.mxu0 0.0
    %169 = vmatpush1.msra.mxu0 0.0
    %170 = vmatprep.subr.mxu0 0.0
    %171 = vmatpush1.msra.mxu0 0.0
    %172 = vmatprep.subr.mxu0 0.0
    %173 = vmatpush1.msra.mxu0 0.0
    %174 = vmatprep.subr.mxu0 0.0
    %175 = vmatpush1.msra.mxu0 0.0
    %176 = vmatprep.subr.mxu0 0.0
    %177 = vmatpush1.msra.mxu0 0.0
    %178 = vmatprep.subr.mxu0 0.0
    %179 = vmatpush1.msra.mxu0 0.0
    %180 = vmatprep.subr.mxu0 0.0
    %181 = vmatpush1.msra.mxu0 0.0
    %182 = vmatprep.subr.mxu0 0.0
    %183 = vmatpush1.msra.mxu0 0.0
    %184 = vmatprep.subr.mxu0 0.0
    %185 = vmatpush1.msra.mxu0 0.0
    %186 = vmatprep.subr.mxu0 0.0
    %187 = vmatpush1.msra.mxu0 0.0
    %188 = vmatprep.subr.mxu0 0.0
    %189 = vmatpush1.msra.mxu0 0.0
    %190 = vmatprep.subr.mxu0 0.0
    %191 = vmatpush1.msra.mxu0 0.0
    %192 = vmatprep.subr.mxu0 0.0
    %193 = vmatpush1.msra.mxu0 0.0
    %194 = vmatprep.subr.mxu0 0.0
    %195 = vmatpush1.msra.mxu0 0.0
    %196 = vmatprep.subr.mxu0 0.0
    %197 = vmatpush1.msra.mxu0 0.0
    %198 = vmatprep.subr.mxu0 0.0
    %199 = vmatpush1.msra.mxu0 0.0
    %200 = vmatprep.subr.mxu0 0.0
    %201 = vmatpush1.msra.mxu0 0.0
    %202 = vmatprep.mubr.f32.mxu0 0.0
    %203 = vmatmul.mubr.f32.gmra.mrb[0].mxu0 %v136
    %v204 = vpop.f32.mrb[0].mxu0
    %v205 = vadd.f32 %v59, %v204
    %v206 = vpop.f32.mrb[0].mxu0
    %207 = vdwg.mxu0
    %v208 = vmul.f32 %v132, %v205
    %vm209 = vcmask 523264
    %v210 = vsel %vm209, %v208, 0.0
    %211 = vadd.xlane.f32.xlu0 %v210
    %v212 = vpop.xlane.xlu0 %211
    %v213 = vmul.f32 %v132, %v132
    %v214 = vsel %vm209, %v213, 0.0
    %215 = vadd.xlane.f32.xlu0 %v214
    %v216 = vpop.xlane.xlu0 %215
    %v217 = vmul.f32 %v205, %v205
    %v218 = vsel %vm209, %v217, 0.0
    %219 = vadd.xlane.f32.xlu0 %v218
    %v220 = vpop.xlane.xlu0 %219
    %v221 = vmax.f32 %v216, 1e-16
    %v222 = vmax.f32 %v220, 1e-16
    %v223 = vmul.f32 %v221, %v222
    %v224 = vrsqrt.pop %v223
    %v225 = vmul.f32 %v212, %v224
    %v226 = vsub.f32 %v225, %v54
    %v227 = vmul.f32 %v226, %v226
    %vm228 = vcmask 7168
    %v229 = vsel %vm228, %v227, 0.0
    %230 = vadd.xlane.f32.xlu0 %v229
    %v231 = vpop.xlane.xlu0 %230
    %v232 = vrot.slane %v231, 4
    %v233 = vadd.f32 %v231, %v232
    %v234 = vrot.slane %v233, 2
    %v235 = vadd.f32 %v233, %v234
    %v236 = vrot.slane %v235, 1
    %v237 = vadd.f32 %v235, %v236
    %s238 = vtos %v237
    %v239 = vstv %s238
    %vm240 = vcmask 0
    %241 = vst.msk [vmem:[#allocation7] sm:$0x1] %vm240, %v239
    // Predicated region
    $region30: #{tpu_custom_call.1} parent=1 // pred_check
      _
    $region31: #{tpu_custom_call.1} parent=1 // pred_check_branch
      %243 = sbr.rel (0) target = $region33
    $region32: #{tpu_custom_call.1} parent=1 // pred_region
      %s245 = ssub.s32 16, 16
      %246 = vsyncadd [#allocation4], %s245
      %s248 = sshll.u32 [#allocation7], 4
      %s249 = int_to_ptr.vmem [resolvable:$true] %s248
      %251 = dma.vmem_to_hbm [thread:$0]  %s249, 16, %s5, [#allocation4]
    $region33: #{tpu_custom_call.1} parent=1 // pred_fallthru
      _
    // Predicated region
    $region34: #{tpu_custom_call.1} parent=1 // pred_check
      _
    $region35: #{tpu_custom_call.1} parent=1 // pred_check_branch
      %253 = sbr.rel (0) target = $region37
    $region36: #{tpu_custom_call.1} parent=1 // pred_region
      %254 = dma.done [#allocation4], 16
    $region37: #{tpu_custom_call.1} parent=1 // pred_fallthru
      _
    %255 = vsyncpa [#allocation3], 1
    %256 = vsyncpa [#allocation6], 1
    %257 = vsyncpa [#allocation4], 1

</llo_original>
